<compile_context>
chip_gen: v7x
topology: tpu7x:2x2x1
jax: 0.10.0
libtpu: 0.0.40
codegen_flags: <defaults>
</compile_context>

<pallas_src>
import jax
import jax.numpy as jnp
from jax.experimental import pallas as pl
from jax.experimental.pallas import tpu as pltpu


_BIG = 1e30  # sentinel squared distance for padded / ignored reference points


def _round_up(x, m):
    return (x + m - 1) // m * m


def _make_chamfer_kernel(tn, tm):
    n_chunks = tm // 128

    def kernel(x_ref, yt_ref, out_ref, acc_ref):
        # x_ref  : (1, TN, 8) augmented query tile   [-2x, ||x||^2, 1, 0,0,0]
        # yt_ref : (1, 8, TM) augmented reference tile, pre-transposed
        # out_ref: (1, 1, TN) sqrt(min squared distance), lane-dense
        # acc_ref: (TN, 128)  running min folded into 128 lanes
        m_idx = pl.program_id(2)

        @pl.when(m_idx == 0)
        def _init():
            acc_ref[...] = jnp.full((tn, 128), jnp.inf, dtype=jnp.float32)

        # Entire ||x||^2 + ||y||^2 - 2 x.y comes out of a single K=8 MXU matmul.
        d = jnp.dot(x_ref[0], yt_ref[0], preferred_element_type=jnp.float32)  # (TN, TM)

        # Deferred cross-lane min: vreg-wise VPU minimum into 128 lanes; the
        # single XLU lane-reduce only happens once per N-tile in _finalize.
        acc = acc_ref[...]
        for c in range(n_chunks):
            acc = jnp.minimum(acc, d[:, c * 128:(c + 1) * 128])
        acc_ref[...] = acc

        @pl.when(m_idx == pl.num_programs(2) - 1)
        def _finalize():
            dmin = jnp.min(acc_ref[...], axis=-1)                  # (TN,)
            # clamp tiny negatives from the expansion once, at the end
            out_ref[0, 0, :] = jnp.sqrt(jnp.maximum(dmin, 0.0))

    return kernel


def chamfer_distance_l1_pm(xyz1, xyz2, ignore_zeros=False, *, tn=256, tm=1024):
    """One-sided Chamfer-L1: mean_i sqrt(min_j ||xyz1_i - xyz2_j||^2)."""
    B, N, C = xyz1.shape
    B2, M, C2 = xyz2.shape
    assert C == 3 and C2 == 3 and B2 == B

    xyz1 = xyz1.astype(jnp.float32)
    xyz2 = xyz2.astype(jnp.float32)

    # ignore_zeros (reference module only applies it for batch_size == 1):
    # implemented by masking instead of shape filtering — ignored reference
    # points get a huge distance, ignored query points get zero mean-weight.
    if ignore_zeros and B == 1:
        valid1 = jnp.sum(xyz1, axis=2) != 0          # (B, N)
        valid2 = jnp.sum(xyz2, axis=2) != 0          # (B, M)
    else:
        valid1 = jnp.ones((B, N), dtype=bool)
        valid2 = jnp.ones((B, M), dtype=bool)

    # Tile sizes (multiples of 128). Working set per step is tiny:
    # x tile 8 KiB, y tile 32 KiB, d tile TN*TM*4 B (1 MiB at 256x1024),
    # acc 128 KiB — comfortably inside every generation's VMEM budget.
    TN = min(tn, _round_up(N, 128))
    TM = min(tm, _round_up(M, 128))
    N_pad = _round_up(N, TN)
    M_pad = _round_up(M, TM)
    pad_n = N_pad - N
    pad_m = M_pad - M

    xx = jnp.sum(xyz1 * xyz1, axis=-1)               # (B, N)
    yy = jnp.sum(xyz2 * xyz2, axis=-1)               # (B, M)
    yy = jnp.where(valid2, yy, _BIG)                 # ignored refs never win min

    # Augmented LHS: columns [-2x, ||x||^2, 1, 0, 0, 0] -> (B, N_pad, 8).
    # Padded query rows are all-zero -> d = 0, excluded from the mean below.
    x_aug = jnp.concatenate(
        [
            -2.0 * xyz1,
            xx[..., None],
            jnp.ones((B, N, 1), jnp.float32),
            jnp.zeros((B, N, 3), jnp.float32),
        ],
        axis=-1,
    )
    x_aug = jnp.pad(x_aug, ((0, 0), (0, pad_n), (0, 0)))

    # Augmented, pre-transposed RHS: rows [y; 1; ||y||^2; 0; 0; 0] -> (B, 8, M_pad).
    # Padded reference columns: coords 0, "one" row 0, ||y||^2 row = BIG.
    y_p = jnp.pad(xyz2, ((0, 0), (0, pad_m), (0, 0)))
    one_m_p = jnp.pad(valid2.astype(jnp.float32), ((0, 0), (0, pad_m)))
    yy_p = jnp.pad(yy, ((0, 0), (0, pad_m)), constant_values=_BIG)
    y_aug_t = jnp.concatenate(
        [
            jnp.transpose(y_p, (0, 2, 1)),           # (B, 3, M_pad)
            one_m_p[:, None, :],                     # (B, 1, M_pad)
            yy_p[:, None, :],                        # (B, 1, M_pad)
            jnp.zeros((B, 3, M_pad), jnp.float32),
        ],
        axis=1,
    )

    grid = (B, N_pad // TN, M_pad // TM)
    per_point = pl.pallas_call(
        _make_chamfer_kernel(TN, TM),
        out_shape=jax.ShapeDtypeStruct((B, 1, N_pad), jnp.float32),
        grid_spec=pltpu.PrefetchScalarGridSpec(
            num_scalar_prefetch=0,
            grid=grid,
            in_specs=[
                pl.BlockSpec((1, TN, 8), lambda b, n, m: (b, n, 0)),
                pl.BlockSpec((1, 8, TM), lambda b, n, m: (b, 0, m)),
            ],
            out_specs=pl.BlockSpec((1, 1, TN), lambda b, n, m: (b, 0, n)),
            scratch_shapes=[pltpu.VMEM((TN, 128), jnp.float32)],
        ),
        compiler_params=pltpu.CompilerParams(
            dimension_semantics=("parallel", "parallel", "arbitrary"),
            vmem_limit_bytes=32 * 1024 * 1024,
        ),
    )(x_aug, y_aug_t)

    # torch.mean(torch.sqrt(dist1)) over the real (and non-ignored) points.
    per_point = per_point[:, 0, :N]                   # (B, N)
    w = valid1.astype(jnp.float32)
    return jnp.sum(per_point * w) / jnp.sum(w)


if __name__ == "__main__":
    key = jax.random.PRNGKey(0)
    k1, k2 = jax.random.split(key)

    B, N, M = 2, 16, 8
    xyz1 = jax.random.normal(k1, (B, N, 3), dtype=jnp.float32)
    xyz2 = jax.random.normal(k2, (B, M, 3), dtype=jnp.float32)

    out = jax.block_until_ready(chamfer_distance_l1_pm(xyz1, xyz2))

    # Reference check in plain JAX (exact (x-y)^2 formulation).
    diff = xyz1[:, :, None, :] - xyz2[:, None, :, :]          # (B, N, M, 3)
    d_sq = jnp.sum(diff * diff, axis=-1)                      # (B, N, M)
    ref = jnp.mean(jnp.sqrt(jnp.min(d_sq, axis=-1)))
    assert jnp.allclose(out, ref, atol=1e-4, rtol=1e-4), (out, ref)

    # ignore_zeros path (batch_size == 1): a few all-zero points are dropped.
    x1 = jax.random.normal(jax.random.PRNGKey(1), (1, 16, 3), dtype=jnp.float32)
    x2 = jax.random.normal(jax.random.PRNGKey(2), (1, 8, 3), dtype=jnp.float32)
    x1 = x1.at[0, 3].set(0.0).at[0, 7].set(0.0)
    x2 = x2.at[0, 2].set(0.0)
    out_z = jax.block_until_ready(chamfer_distance_l1_pm(x1, x2, ignore_zeros=True))

    v1 = jnp.sum(x1[0], axis=1) != 0
    v2 = jnp.sum(x2[0], axis=1) != 0
    d2 = jnp.sum((x1[0][:, None, :] - x2[0][None, :, :]) ** 2, axis=-1)
    d2 = jnp.where(v2[None, :], d2, jnp.inf)
    ref_z = jnp.sum(jnp.sqrt(jnp.min(d2, axis=-1)) * v1) / jnp.sum(v1)
    assert jnp.allclose(out_z, ref_z, atol=1e-4, rtol=1e-4), (out_z, ref_z)

    # TODO(synk): nearest-neighbor squared distances come from the
    # ||x||^2+||y||^2-2x.y expansion in f32; for extremely tight accuracy the
    # winning distance could be recomputed exactly, not done here.
    print("KERNEL_OK")
</pallas_src>

<mosaic_0001>
module attributes {stable_mosaic.version = 11 : i64} {
  func.func @kernel(%arg0: i32, %arg1: i32, %arg2: i32, %arg3: memref<1x128x8xf32, #tpu.memory_space<vmem>>, %arg4: memref<1x8x128xf32, #tpu.memory_space<vmem>>, %arg5: memref<1x1x128xf32, #tpu.memory_space<vmem>>, %arg6: memref<128x128xf32, #tpu.memory_space<vmem>>) attributes {dimension_semantics = [#tpu.dimension_semantics<parallel>, #tpu.dimension_semantics<parallel>, #tpu.dimension_semantics<arbitrary>], iteration_bounds = array<i64: 2, 1, 1>, scalar_prefetch = 0 : i64, scratch_operands = 1 : i64, tpu.core_type = #tpu.core_type<tc>, window_params = [{transform_indices = @transform_0, window_bounds = array<i64: 1, 128, 8>}, {transform_indices = @transform_1, window_bounds = array<i64: 1, 8, 128>}, {transform_indices = @transform_2, window_bounds = array<i64: 1, 1, 128>}]} {
    %c0_i32 = arith.constant 0 : i32
    %0 = arith.cmpi eq, %arg2, %c0_i32 : i32
    %1 = arith.extui %0 : i1 to i32
    %c0_i32_0 = arith.constant 0 : i32
    %2 = arith.cmpi ne, %1, %c0_i32_0 : i32
    scf.if %2 {
      %cst_12 = arith.constant 0x7F800000 : f32
      %14 = vector.broadcast %cst_12 : f32 to vector<128x128xf32>
      %c0_13 = arith.constant 0 : index
      %c0_14 = arith.constant 0 : index
      %15 = vector.load %arg6[%c0_13, %c0_14] : memref<128x128xf32, #tpu.memory_space<vmem>>, vector<128x128xf32>
      tpu.vector_store %arg6[%c0_13, %c0_14], %14 {strides = array<i32>} : memref<128x128xf32, #tpu.memory_space<vmem>>, vector<128x128xf32>,
    } else {
    }
    %c0 = arith.constant 0 : index
    %c0_1 = arith.constant 0 : index
    %c0_2 = arith.constant 0 : index
    %3 = vector.load %arg3[%c0, %c0_1, %c0_2] : memref<1x128x8xf32, #tpu.memory_space<vmem>>, vector<1x128x8xf32>
    %4 = vector.shape_cast %3 : vector<1x128x8xf32> to vector<128x8xf32>
    %c0_3 = arith.constant 0 : index
    %c0_4 = arith.constant 0 : index
    %c0_5 = arith.constant 0 : index
    %5 = vector.load %arg4[%c0_3, %c0_4, %c0_5] : memref<1x8x128xf32, #tpu.memory_space<vmem>>, vector<1x8x128xf32>
    %6 = vector.shape_cast %5 : vector<1x8x128xf32> to vector<8x128xf32>
    %cst = arith.constant dense<0.000000e+00> : vector<128x128xf32>
    %7 = tpu.matmul %4, %6, %cst {dimension_numbers = #tpu.dot_dimension_numbers<[1], [0], [0], [1], [0, 0, 1, 1], [], []>} : vector<128x8xf32>, vector<8x128xf32>, vector<128x128xf32> -> vector<128x128xf32>
    %c0_6 = arith.constant 0 : index
    %c0_7 = arith.constant 0 : index
    %8 = vector.load %arg6[%c0_6, %c0_7] : memref<128x128xf32, #tpu.memory_space<vmem>>, vector<128x128xf32>
    %9 = arith.minimumf %8, %7 : vector<128x128xf32>
    %c0_8 = arith.constant 0 : index
    %c0_9 = arith.constant 0 : index
    %10 = vector.load %arg6[%c0_8, %c0_9] : memref<128x128xf32, #tpu.memory_space<vmem>>, vector<128x128xf32>
    tpu.vector_store %arg6[%c0_8, %c0_9], %9 {strides = array<i32>} : memref<128x128xf32, #tpu.memory_space<vmem>>, vector<128x128xf32>,
    %c0_i32_10 = arith.constant 0 : i32
    %11 = arith.cmpi eq, %arg2, %c0_i32_10 : i32
    %12 = arith.extui %11 : i1 to i32
    %c0_i32_11 = arith.constant 0 : i32
    %13 = arith.cmpi ne, %12, %c0_i32_11 : i32
    scf.if %13 {
      %c0_12 = arith.constant 0 : index
      %c0_13 = arith.constant 0 : index
      %14 = vector.load %arg6[%c0_12, %c0_13] : memref<128x128xf32, #tpu.memory_space<vmem>>, vector<128x128xf32>
      %cst_14 = arith.constant dense<0x7F800000> : vector<128xf32>
      %15 = vector.multi_reduction <minimumf>, %14, %cst_14 [1] : vector<128x128xf32> to vector<128xf32>
      %cst_15 = arith.constant 0.000000e+00 : f32
      %16 = vector.broadcast %cst_15 : f32 to vector<128xf32>
      %17 = arith.maximumf %15, %16 : vector<128xf32>
      %18 = math.sqrt %17 : vector<128xf32>
      %c0_16 = arith.constant 0 : index
      %c0_17 = arith.constant 0 : index
      %c0_18 = arith.constant 0 : index
      %19 = vector.load %arg5[%c0_16, %c0_17, %c0_18] : memref<1x1x128xf32, #tpu.memory_space<vmem>>, vector<1x1x128xf32>
      %20 = vector.shape_cast %19 : vector<1x1x128xf32> to vector<128xf32>
      %21 = vector.shape_cast %18 : vector<128xf32> to vector<1x1x128xf32>
      tpu.vector_store %arg5[%c0_16, %c0_17, %c0_18], %21 {strides = array<i32>} : memref<1x1x128xf32, #tpu.memory_space<vmem>>, vector<1x1x128xf32>,
    } else {
    }
    return
  }
  func.func @transform_0(%arg0: i32, %arg1: i32, %arg2: i32) -> (i32, i32, i32) {
    %c0_i32 = arith.constant 0 : i32
    %c0_i32_0 = arith.constant 0 : i32
    return %arg0, %arg1, %c0_i32 : i32, i32, i32
  }
  func.func @transform_1(%arg0: i32, %arg1: i32, %arg2: i32) -> (i32, i32, i32) {
    %c0_i32 = arith.constant 0 : i32
    %c0_i32_0 = arith.constant 0 : i32
    return %arg0, %c0_i32, %arg2 : i32, i32, i32
  }
  func.func @transform_2(%arg0: i32, %arg1: i32, %arg2: i32) -> (i32, i32, i32) {
    %c0_i32 = arith.constant 0 : i32
    %c0_i32_0 = arith.constant 0 : i32
    return %arg0, %c0_i32, %arg1 : i32, i32, i32
  }
}

</mosaic_0001>

<llo_original>
// kernel: tpu_custom_call.1
$region0: #{tpu_custom_call.1}
  #allocation0 [shape = 'u32[]', space=smem, size = 0x4, offset = 0x4, fixed_abs, tag = 'smem constant byte address 0x4 - core index']
  #allocation1 [shape = 'u32[144,128]{1,0:T(1,128)}', space=vmem, size = 0x12000, scoped, tag = 'internal scratch']
  #allocation2 [shape = 'f32[128,128]{1,0:T(8,128)}', space=vmem, size = 0x10000, scoped, tag = 'scratch operand']
  %s0 = inlined_call_operand.vmem [shape: f32[2,128,8], index: 0, kind: input, shape index: {}]
  %s1 = inlined_call_operand.vmem [shape: f32[2,8,128], index: 1, kind: input, shape index: {}]
  %s2 = inlined_call_operand.hbm [shape: f32[2,1,128], index: 2, kind: output, shape index: {}]
  %s3 = sld [smem:[#allocation0]]
  $region49: #{tpu_custom_call.1} parent=0
    _
  %s5 = ssub.s32 1, %s3
  %s6 = scalar_select 0, %s5, %s3
  $region1: #{tpu_custom_call.1} parent=0
    #allocation3 [shape = 'u8[1024]{0}', space=vmem, size = 0x400, scoped, tag = 'output window, operand 0']
    #allocation4 [shape = 's32[2]{0}', space=sflag, size = 0x8, scoped, tag = 'scoped memory for tpu_custom_call.1']
    %7 = vsyncpa [#allocation4], 0
    %s8 = scalar_lea.sflag [#allocation4], 1
    %9 = vsyncpa %s8, 0
    loop: start=0, step=1, limit=4
    $region2: #{tpu_custom_call.1} parent=1 // loop_pre_header
      _
    $region3: #{tpu_custom_call.1} parent=1 // loop_header
      %s11 = sphi 0, %s15
      %p12 = scmp.ge.s32.totalorder %s11, 4
      %s18 = sphi 0, %s37
      %s19 = sphi 0, %s33
      %s20 = sphi 0, %s29
      %s21 = sphi 0, %s18
      %s22 = sphi 0, %s19
      %s23 = sphi 0, %s20
      %s24 = sphi 0, %s21
      %s25 = sphi 0, %s22
      %s26 = sphi 0, %s23
      %s42 = sphi 0, %s44
      %s45 = sphi 0, %s42
      %s46 = sphi 0, %s45
      %s62 = sphi 0, %s46
      %s70 = sphi 0, %s72
      %s73 = sphi 0, %s70
      %s74 = sphi 0, %s73
      %s90 = sphi 0, %s74
      %s98 = sphi 0, %s100
      %s101 = sphi 0, %s98
      %s102 = sphi 0, %s101
      %s118 = sphi 0, %s102
    $region4: #{tpu_custom_call.1} parent=1 // loop_header_branch
      %14 = sbr.rel (%p12) target = $region8
    $region5: #{tpu_custom_call.1} parent=1 // loop_body
      %s16 = ssub.s32 %s11, 1
      %s17 = ssub.s32 %s11, 2
      %s27 = sadd.s32 1, %s20
      %p28 = scmp.ge.s32.totalorder %s27, 1
      %s29 = scalar_select %p28, 0, %s27
      %s30 = sadd.s32 1, %s19
      %s31 = scalar_select %p28, %s30, %s19
      %p32 = scmp.ge.s32.totalorder %s31, 1
      %s33 = scalar_select %p32, 0, %s31
      %s34 = sadd.s32 1, %s18
      %s35 = scalar_select %p32, %s34, %s18
      %p36 = scmp.ge.s32.totalorder %s35, 2
      %s37 = scalar_select %p36, 0, %s35
      %s38 = ssub.s32 %s18, %s37
      %s39 = ssub.s32 %s19, %s33
      %s40 = sor.u32 %s38, %s39
      %p41 = scmp.eq.s32.totalorder %s40, 0
      %s43 = sadd.s32 %s42, 1
      %s44 = scalar_select %p41, %s42, %s43
      %p47 = pneg %p41
      %p48 = scmp.eq.s32.totalorder %s11, 1
      %p49 = por %p47, %p48
      %p50 = scmp.ne.s32.totalorder %s42, %s45
      %p51 = scmp.eq.s32.totalorder %s11, 0
      %p52 = por %p50, %p51
      %p53 = scmp.ne.s32.totalorder %s42, %s45
      %p54 = scmp.eq.s32.totalorder %s16, 1
      %p55 = por %p53, %p54
      %p56 = scmp.ne.s32.totalorder %s45, %s46
      %p57 = scmp.eq.s32.totalorder %s16, 0
      %p58 = por %p56, %p57
      %p59 = scmp.ne.s32.totalorder %s45, %s46
      %p60 = scmp.eq.s32.totalorder %s17, 1
      %p61 = por %p59, %p60
      %p63 = scmp.ne.s32.totalorder %s46, %s62
      %p64 = scmp.eq.s32.totalorder %s17, 0
      %p65 = por %p63, %p64
      %s66 = ssub.s32 %s18, %s37
      %s67 = ssub.s32 %s20, %s29
      %s68 = sor.u32 %s66, %s67
      %p69 = scmp.eq.s32.totalorder %s68, 0
      %s71 = sadd.s32 %s70, 1
      %s72 = scalar_select %p69, %s70, %s71
      %p75 = pneg %p69
      %p76 = scmp.eq.s32.totalorder %s11, 1
      %p77 = por %p75, %p76
      %p78 = scmp.ne.s32.totalorder %s70, %s73
      %p79 = scmp.eq.s32.totalorder %s11, 0
      %p80 = por %p78, %p79
      %p81 = scmp.ne.s32.totalorder %s70, %s73
      %p82 = scmp.eq.s32.totalorder %s16, 1
      %p83 = por %p81, %p82
      %p84 = scmp.ne.s32.totalorder %s73, %s74
      %p85 = scmp.eq.s32.totalorder %s16, 0
      %p86 = por %p84, %p85
      %p87 = scmp.ne.s32.totalorder %s73, %s74
      %p88 = scmp.eq.s32.totalorder %s17, 1
      %p89 = por %p87, %p88
      %p91 = scmp.ne.s32.totalorder %s74, %s90
      %p92 = scmp.eq.s32.totalorder %s17, 0
      %p93 = por %p91, %p92
      %s94 = ssub.s32 %s18, %s37
      %s95 = ssub.s32 %s19, %s33
      %s96 = sor.u32 %s94, %s95
      %p97 = scmp.eq.s32.totalorder %s96, 0
      %s99 = sadd.s32 %s98, 1
      %s100 = scalar_select %p97, %s98, %s99
      %p103 = pneg %p97
      %p104 = scmp.eq.s32.totalorder %s11, 1
      %p105 = por %p103, %p104
      %p106 = scmp.ne.s32.totalorder %s98, %s101
      %p107 = scmp.eq.s32.totalorder %s11, 0
      %p108 = por %p106, %p107
      %p109 = scmp.ne.s32.totalorder %s98, %s101
      %p110 = scmp.eq.s32.totalorder %s16, 1
      %p111 = por %p109, %p110
      %p112 = scmp.ne.s32.totalorder %s101, %s102
      %p113 = scmp.eq.s32.totalorder %s16, 0
      %p114 = por %p112, %p113
      %p115 = scmp.ne.s32.totalorder %s101, %s102
      %p116 = scmp.eq.s32.totalorder %s17, 1
      %p117 = por %p115, %p116
      %p119 = scmp.ne.s32.totalorder %s102, %s118
      %p120 = scmp.eq.s32.totalorder %s17, 0
      %p121 = por %p119, %p120
      %p122 = scmp.le.s32.totalorder 1, %s11
      %p123 = scmp.lt.s32.totalorder %s11, 3
      %p124 = pnand %p122, %p123
      %p125 = pneg %p124
      // Predicated region
      $region9: #{tpu_custom_call.1} parent=5 // pred_check
        _
      $region10: #{tpu_custom_call.1} parent=5 // pred_check_branch
        %127 = sbr.rel (%p124) target = $region12
      $region11: #{tpu_custom_call.1} parent=5 // pred_region
        %s128 = ssub.s32 %s11, 1
      $region12: #{tpu_custom_call.1} parent=5 // pred_fallthru
        _
      %p129 = scmp.lt.s32.totalorder %s11, 2
      // Predicated region
      $region13: #{tpu_custom_call.1} parent=5 // pred_check
        %p130 = pneg %p129
      $region14: #{tpu_custom_call.1} parent=5 // pred_check_branch
        %132 = sbr.rel (%p130) target = $region16
      $region15: #{tpu_custom_call.1} parent=5 // pred_region
        // Predicated region
        $region17: #{tpu_custom_call.1} parent=15 // pred_check
          %p133 = pneg %p52
        $region18: #{tpu_custom_call.1} parent=15 // pred_check_branch
          %135 = sbr.rel (%p133) target = $region20
        $region19: #{tpu_custom_call.1} parent=15 // pred_region
          %s136 = smul.u32 16, %s19
          %p137 = scmp.lt.s32.totalorder %s18, 1
          %s138 = scalar_select %p137, %s18, 1
          %p139 = scmp.lt.s32.totalorder %s136, 15
          %s140 = scalar_select %p139, %s136, 15
          %s141 = smul.addr %s138, 16
          %s142 = sadd.s32 %s140, %s141
          %s143 = smul.addr %s142, 8
          %s144 = scalar_lea.vmem %s0, %s143
          %s145 = smul.u32 16, %s19
        $region20: #{tpu_custom_call.1} parent=15 // pred_fallthru
          _
        // Predicated region
        $region21: #{tpu_custom_call.1} parent=15 // pred_check
          %p146 = pneg %p80
        $region22: #{tpu_custom_call.1} parent=15 // pred_check_branch
          %148 = sbr.rel (%p146) target = $region24
        $region23: #{tpu_custom_call.1} parent=15 // pred_region
          %p149 = scmp.lt.s32.totalorder %s18, 1
          %s150 = scalar_select %p149, %s18, 1
          %p151 = scmp.lt.s32.totalorder %s20, 0
          %s152 = scalar_select %p151, %s20, 0
          %s153 = sadd.s32 %s152, %s150
          %s154 = smul.addr %s153, 8
          %s155 = scalar_lea.vmem %s1, %s154
        $region24: #{tpu_custom_call.1} parent=15 // pred_fallthru
          _
      $region16: #{tpu_custom_call.1} parent=5 // pred_fallthru
        _
      %p156 = scmp.le.s32.totalorder 1, %s11
      %p157 = scmp.lt.s32.totalorder %s11, 3
      %p158 = pnand %p156, %p157
      %p159 = pneg %p158
      // Predicated region
      $region25: #{tpu_custom_call.1} parent=5 // pred_check
        _
      $region26: #{tpu_custom_call.1} parent=5 // pred_check_branch
        %161 = sbr.rel (%p158) target = $region28
      $region27: #{tpu_custom_call.1} parent=5 // pred_region
        %s162 = ssub.s32 %s11, 1
        %s163 = smul.u32 16, %s22
        %p164 = scmp.lt.s32.totalorder %s21, 1
        %s165 = scalar_select %p164, %s21, 1
        %p166 = scmp.lt.s32.totalorder %s163, 15
        %s167 = scalar_select %p166, %s163, 15
        %s168 = smul.addr %s165, 16
        %s169 = sadd.s32 %s167, %s168
        %s170 = smul.addr %s169, 8
        %s171 = scalar_lea.vmem %s0, %s170
        %p172 = pneg %p58
        %p173 = pneg %p55
        %p174 = scmp.lt.s32.totalorder %s21, 1
        %s175 = scalar_select %p174, %s21, 1
        %p176 = scmp.lt.s32.totalorder %s23, 0
        %s177 = scalar_select %p176, %s23, 0
        %s178 = sadd.s32 %s177, %s175
        %s179 = smul.addr %s178, 8
        %s180 = scalar_lea.vmem %s1, %s179
        %p181 = pneg %p86
        %p182 = pneg %p83
        %p183 = pneg %p114
        %p184 = pneg %p111
        %s185 = sand.u32 %s101, 1
        %s186 = scalar_lea.sflag [#allocation4], %s185
        %s187 = sand.u32 %s101, 1
        %s188 = scalar_lea.vmem [#allocation3], %s187
        %s189 = smul.u32 16, %s22
        %p190 = scmp.lt.s32.totalorder %s21, 1
        %s191 = scalar_select %p190, %s21, 1
        %p192 = scmp.lt.s32.totalorder %s189, 15
        %s193 = scalar_select %p192, %s189, 15
        %s194 = smul.addr %s191, 16
        %s195 = sadd.s32 %s193, %s194
        %s196 = smul.addr %s195, 8
        %s197 = scalar_lea.vmem %s0, %s196
        %s198 = smul.u32 16, %s22
        %p199 = scmp.lt.s32.totalorder %s21, 1
        %s200 = scalar_select %p199, %s21, 1
        %p201 = scmp.lt.s32.totalorder %s23, 0
        %s202 = scalar_select %p201, %s23, 0
        %s203 = sadd.s32 %s202, %s200
        %s204 = smul.addr %s203, 8
        %s205 = scalar_lea.vmem %s1, %s204
        %p206 = scmp.eq.s32.totalorder %s23, 0
        // Predicated region
        $region29: #{tpu_custom_call.1} parent=27 // pred_check
          %p207 = pneg %p206
        $region30: #{tpu_custom_call.1} parent=27 // pred_check_branch
          %209 = sbr.rel (%p207) target = $region32
        $region31: #{tpu_custom_call.1} parent=27 // pred_region
          %210 = vst [vmem:[#allocation2] sm:$0xff] inf
          %211 = vst [vmem:[#allocation2 + $0x8] sm:$0xff] inf
          %212 = vst [vmem:[#allocation2 + $0x10] sm:$0xff] inf
          %213 = vst [vmem:[#allocation2 + $0x18] sm:$0xff] inf
          %214 = vst [vmem:[#allocation2 + $0x20] sm:$0xff] inf
          %215 = vst [vmem:[#allocation2 + $0x28] sm:$0xff] inf
          %216 = vst [vmem:[#allocation2 + $0x30] sm:$0xff] inf
          %217 = vst [vmem:[#allocation2 + $0x38] sm:$0xff] inf
          %218 = vst [vmem:[#allocation2 + $0x40] sm:$0xff] inf
          %219 = vst [vmem:[#allocation2 + $0x48] sm:$0xff] inf
          %220 = vst [vmem:[#allocation2 + $0x50] sm:$0xff] inf
          %221 = vst [vmem:[#allocation2 + $0x58] sm:$0xff] inf
          %222 = vst [vmem:[#allocation2 + $0x60] sm:$0xff] inf
          %223 = vst [vmem:[#allocation2 + $0x68] sm:$0xff] inf
          %224 = vst [vmem:[#allocation2 + $0x70] sm:$0xff] inf
          %225 = vst [vmem:[#allocation2 + $0x78] sm:$0xff] inf
        $region32: #{tpu_custom_call.1} parent=27 // pred_fallthru
          _
        %v226 = vld [vmem:[%s197] sm:$0xff]
        %v227 = vld [vmem:[%s197 + $0x8] sm:$0xff]
        %v228 = vld [vmem:[%s197 + $0x10] sm:$0xff]
        %v229 = vld [vmem:[%s197 + $0x18] sm:$0xff]
        %v230 = vld [vmem:[%s197 + $0x20] sm:$0xff]
        %v231 = vld [vmem:[%s197 + $0x28] sm:$0xff]
        %v232 = vld [vmem:[%s197 + $0x30] sm:$0xff]
        %v233 = vld [vmem:[%s197 + $0x38] sm:$0xff]
        %v234 = vld [vmem:[%s197 + $0x40] sm:$0xff]
        %v235 = vld [vmem:[%s197 + $0x48] sm:$0xff]
        %v236 = vld [vmem:[%s197 + $0x50] sm:$0xff]
        %v237 = vld [vmem:[%s197 + $0x58] sm:$0xff]
        %v238 = vld [vmem:[%s197 + $0x60] sm:$0xff]
        %v239 = vld [vmem:[%s197 + $0x68] sm:$0xff]
        %v240 = vld [vmem:[%s197 + $0x70] sm:$0xff]
        %v241 = vld [vmem:[%s197 + $0x78] sm:$0xff]
        %v242 = vld [vmem:[%s205] sm:$0xff]
        %vm243 = vcmask 64512
        %v245 = vsel %vm243, %v226, 0
        %v248 = vsel %vm243, %v227, 0
        %v251 = vsel %vm243, %v228, 0
        %v254 = vsel %vm243, %v229, 0
        %v257 = vsel %vm243, %v230, 0
        %v260 = vsel %vm243, %v231, 0
        %v263 = vsel %vm243, %v232, 0
        %v266 = vsel %vm243, %v233, 0
        %v269 = vsel %vm243, %v234, 0
        %v272 = vsel %vm243, %v235, 0
        %v275 = vsel %vm243, %v236, 0
        %v278 = vsel %vm243, %v237, 0
        %v281 = vsel %vm243, %v238, 0
        %v284 = vsel %vm243, %v239, 0
        %v287 = vsel %vm243, %v240, 0
        %v290 = vsel %vm243, %v241, 0
        %292 = vmatprep.subr.mxu0 0.0
        %293 = vmatpush1.msra.mxu0 %v242
        %294 = vmatprep.subr.mxu0 0.0
        %295 = vmatpush1.msra.mxu0 0.0
        %296 = vmatprep.subr.mxu0 0.0
        %297 = vmatpush1.msra.mxu0 0.0
        %298 = vmatprep.subr.mxu0 0.0
        %299 = vmatpush1.msra.mxu0 0.0
        %300 = vmatprep.subr.mxu0 0.0
        %301 = vmatpush1.msra.mxu0 0.0
        %302 = vmatprep.subr.mxu0 0.0
        %303 = vmatpush1.msra.mxu0 0.0
        %304 = vmatprep.subr.mxu0 0.0
        %305 = vmatpush1.msra.mxu0 0.0
        %306 = vmatprep.subr.mxu0 0.0
        %307 = vmatpush1.msra.mxu0 0.0
        %308 = vmatprep.subr.mxu0 0.0
        %309 = vmatpush1.msra.mxu0 0.0
        %310 = vmatprep.subr.mxu0 0.0
        %311 = vmatpush1.msra.mxu0 0.0
        %312 = vmatprep.subr.mxu0 0.0
        %313 = vmatpush1.msra.mxu0 0.0
        %314 = vmatprep.subr.mxu0 0.0
        %315 = vmatpush1.msra.mxu0 0.0
        %316 = vmatprep.subr.mxu0 0.0
        %317 = vmatpush1.msra.mxu0 0.0
        %318 = vmatprep.subr.mxu0 0.0
        %319 = vmatpush1.msra.mxu0 0.0
        %320 = vmatprep.subr.mxu0 0.0
        %321 = vmatpush1.msra.mxu0 0.0
        %322 = vmatprep.subr.mxu0 0.0
        %323 = vmatpush1.msra.mxu0 0.0
        %324 = vmatprep.subr.mxu0 0.0
        %325 = vmatpush1.msra.mxu0 0.0
        %326 = vmatprep.subr.mxu0 0.0
        %327 = vmatpush1.msra.mxu0 0.0
        %328 = vmatprep.subr.mxu0 0.0
        %329 = vmatpush1.msra.mxu0 0.0
        %330 = vmatprep.subr.mxu0 0.0
        %331 = vmatpush1.msra.mxu0 0.0
        %332 = vmatprep.subr.mxu0 0.0
        %333 = vmatpush1.msra.mxu0 0.0
        %334 = vmatprep.subr.mxu0 0.0
        %335 = vmatpush1.msra.mxu0 0.0
        %336 = vmatprep.subr.mxu0 0.0
        %337 = vmatpush1.msra.mxu0 0.0
        %338 = vmatprep.subr.mxu0 0.0
        %339 = vmatpush1.msra.mxu0 0.0
        %340 = vmatprep.subr.mxu0 0.0
        %341 = vmatpush1.msra.mxu0 0.0
        %342 = vmatprep.subr.mxu0 0.0
        %343 = vmatpush1.msra.mxu0 0.0
        %344 = vmatprep.subr.mxu0 0.0
        %345 = vmatpush1.msra.mxu0 0.0
        %346 = vmatprep.subr.mxu0 0.0
        %347 = vmatpush1.msra.mxu0 0.0
        %348 = vmatprep.subr.mxu0 0.0
        %349 = vmatpush1.msra.mxu0 0.0
        %350 = vmatprep.subr.mxu0 0.0
        %351 = vmatpush1.msra.mxu0 0.0
        %352 = vmatprep.subr.mxu0 0.0
        %353 = vmatpush1.msra.mxu0 0.0
        %354 = vmatprep.subr.mxu0 0.0
        %355 = vmatpush1.msra.mxu0 0.0
        %356 = vmatprep.mubr.f32.mxu0 0.0
        %357 = vmatmul.mubr.f32.gmra.mrb[0].mxu0 %v245
        %v358 = vpop.f32.mrb[0].mxu0
        %v359 = vadd.f32 0.0, %v358
        %v360 = vpop.f32.mrb[0].mxu0
        %361 = vmatprep.mubr.f32.mxu0 0.0
        %362 = vmatmul.mubr.f32.gmra.mrb[0].mxu0 %v248
        %v363 = vpop.f32.mrb[0].mxu0
        %v364 = vadd.f32 0.0, %v363
        %v365 = vpop.f32.mrb[0].mxu0
        %366 = vmatprep.mubr.f32.mxu0 0.0
        %367 = vmatmul.mubr.f32.gmra.mrb[0].mxu0 %v251
        %v368 = vpop.f32.mrb[0].mxu0
        %v369 = vadd.f32 0.0, %v368
        %v370 = vpop.f32.mrb[0].mxu0
        %371 = vmatprep.mubr.f32.mxu0 0.0
        %372 = vmatmul.mubr.f32.gmra.mrb[0].mxu0 %v254
        %v373 = vpop.f32.mrb[0].mxu0
        %v374 = vadd.f32 0.0, %v373
        %v375 = vpop.f32.mrb[0].mxu0
        %376 = vmatprep.mubr.f32.mxu0 0.0
        %377 = vmatmul.mubr.f32.gmra.mrb[0].mxu0 %v257
        %v378 = vpop.f32.mrb[0].mxu0
        %v379 = vadd.f32 0.0, %v378
        %v380 = vpop.f32.mrb[0].mxu0
        %381 = vmatprep.mubr.f32.mxu0 0.0
        %382 = vmatmul.mubr.f32.gmra.mrb[0].mxu0 %v260
        %v383 = vpop.f32.mrb[0].mxu0
        %v384 = vadd.f32 0.0, %v383
        %v385 = vpop.f32.mrb[0].mxu0
        %386 = vmatprep.mubr.f32.mxu0 0.0
        %387 = vmatmul.mubr.f32.gmra.mrb[0].mxu0 %v263
        %v388 = vpop.f32.mrb[0].mxu0
        %v389 = vadd.f32 0.0, %v388
        %v390 = vpop.f32.mrb[0].mxu0
        %391 = vmatprep.mubr.f32.mxu0 0.0
        %392 = vmatmul.mubr.f32.gmra.mrb[0].mxu0 %v266
        %v393 = vpop.f32.mrb[0].mxu0
        %v394 = vadd.f32 0.0, %v393
        %v395 = vpop.f32.mrb[0].mxu0
        %396 = vmatprep.mubr.f32.mxu0 0.0
        %397 = vmatmul.mubr.f32.gmra.mrb[0].mxu0 %v269
        %v398 = vpop.f32.mrb[0].mxu0
        %v399 = vadd.f32 0.0, %v398
        %v400 = vpop.f32.mrb[0].mxu0
        %401 = vmatprep.mubr.f32.mxu0 0.0
        %402 = vmatmul.mubr.f32.gmra.mrb[0].mxu0 %v272
        %v403 = vpop.f32.mrb[0].mxu0
        %v404 = vadd.f32 0.0, %v403
        %v405 = vpop.f32.mrb[0].mxu0
        %406 = vmatprep.mubr.f32.mxu0 0.0
        %407 = vmatmul.mubr.f32.gmra.mrb[0].mxu0 %v275
        %v408 = vpop.f32.mrb[0].mxu0
        %v409 = vadd.f32 0.0, %v408
        %v410 = vpop.f32.mrb[0].mxu0
        %411 = vmatprep.mubr.f32.mxu0 0.0
        %412 = vmatmul.mubr.f32.gmra.mrb[0].mxu0 %v278
        %v413 = vpop.f32.mrb[0].mxu0
        %v414 = vadd.f32 0.0, %v413
        %v415 = vpop.f32.mrb[0].mxu0
        %416 = vmatprep.mubr.f32.mxu0 0.0
        %417 = vmatmul.mubr.f32.gmra.mrb[0].mxu0 %v281
        %v418 = vpop.f32.mrb[0].mxu0
        %v419 = vadd.f32 0.0, %v418
        %v420 = vpop.f32.mrb[0].mxu0
        %421 = vmatprep.mubr.f32.mxu0 0.0
        %422 = vmatmul.mubr.f32.gmra.mrb[0].mxu0 %v284
        %v423 = vpop.f32.mrb[0].mxu0
        %v424 = vadd.f32 0.0, %v423
        %v425 = vpop.f32.mrb[0].mxu0
        %426 = vmatprep.mubr.f32.mxu0 0.0
        %427 = vmatmul.mubr.f32.gmra.mrb[0].mxu0 %v287
        %v428 = vpop.f32.mrb[0].mxu0
        %v429 = vadd.f32 0.0, %v428
        %v430 = vpop.f32.mrb[0].mxu0
        %431 = vmatprep.mubr.f32.mxu0 0.0
        %432 = vmatmul.mubr.f32.gmra.mrb[0].mxu0 %v290
        %v433 = vpop.f32.mrb[0].mxu0
        %v434 = vadd.f32 0.0, %v433
        %v435 = vpop.f32.mrb[0].mxu0
        %436 = vdwg.mxu0
        %v437 = vld [vmem:[#allocation2] sm:$0xff]
        %v438 = vld [vmem:[#allocation2 + $0x8] sm:$0xff]
        %v439 = vld [vmem:[#allocation2 + $0x10] sm:$0xff]
        %v440 = vld [vmem:[#allocation2 + $0x18] sm:$0xff]
        %v441 = vld [vmem:[#allocation2 + $0x20] sm:$0xff]
        %v442 = vld [vmem:[#allocation2 + $0x28] sm:$0xff]
        %v443 = vld [vmem:[#allocation2 + $0x30] sm:$0xff]
        %v444 = vld [vmem:[#allocation2 + $0x38] sm:$0xff]
        %v445 = vld [vmem:[#allocation2 + $0x40] sm:$0xff]
        %v446 = vld [vmem:[#allocation2 + $0x48] sm:$0xff]
        %v447 = vld [vmem:[#allocation2 + $0x50] sm:$0xff]
        %v448 = vld [vmem:[#allocation2 + $0x58] sm:$0xff]
        %v449 = vld [vmem:[#allocation2 + $0x60] sm:$0xff]
        %v450 = vld [vmem:[#allocation2 + $0x68] sm:$0xff]
        %v451 = vld [vmem:[#allocation2 + $0x70] sm:$0xff]
        %v452 = vld [vmem:[#allocation2 + $0x78] sm:$0xff]
        %v453 = vmin.f32 %v437, %v359
        %v454 = vmin.f32 %v438, %v364
        %v455 = vmin.f32 %v439, %v369
        %v456 = vmin.f32 %v440, %v374
        %v457 = vmin.f32 %v441, %v379
        %v458 = vmin.f32 %v442, %v384
        %v459 = vmin.f32 %v443, %v389
        %v460 = vmin.f32 %v444, %v394
        %v461 = vmin.f32 %v445, %v399
        %v462 = vmin.f32 %v446, %v404
        %v463 = vmin.f32 %v447, %v409
        %v464 = vmin.f32 %v448, %v414
        %v465 = vmin.f32 %v449, %v419
        %v466 = vmin.f32 %v450, %v424
        %v467 = vmin.f32 %v451, %v429
        %v468 = vmin.f32 %v452, %v434
        %469 = vst [vmem:[#allocation2] sm:$0xff] %v453
        %470 = vst [vmem:[#allocation2 + $0x8] sm:$0xff] %v454
        %471 = vst [vmem:[#allocation2 + $0x10] sm:$0xff] %v455
        %472 = vst [vmem:[#allocation2 + $0x18] sm:$0xff] %v456
        %473 = vst [vmem:[#allocation2 + $0x20] sm:$0xff] %v457
        %474 = vst [vmem:[#allocation2 + $0x28] sm:$0xff] %v458
        %475 = vst [vmem:[#allocation2 + $0x30] sm:$0xff] %v459
        %476 = vst [vmem:[#allocation2 + $0x38] sm:$0xff] %v460
        %477 = vst [vmem:[#allocation2 + $0x40] sm:$0xff] %v461
        %478 = vst [vmem:[#allocation2 + $0x48] sm:$0xff] %v462
        %479 = vst [vmem:[#allocation2 + $0x50] sm:$0xff] %v463
        %480 = vst [vmem:[#allocation2 + $0x58] sm:$0xff] %v464
        %481 = vst [vmem:[#allocation2 + $0x60] sm:$0xff] %v465
        %482 = vst [vmem:[#allocation2 + $0x68] sm:$0xff] %v466
        %483 = vst [vmem:[#allocation2 + $0x70] sm:$0xff] %v467
        %484 = vst [vmem:[#allocation2 + $0x78] sm:$0xff] %v468
        // Predicated region
        $region33: #{tpu_custom_call.1} parent=27 // pred_check
          %p485 = pneg %p206
        $region34: #{tpu_custom_call.1} parent=27 // pred_check_branch
          %487 = sbr.rel (%p485) target = $region36
        $region35: #{tpu_custom_call.1} parent=27 // pred_region
          %v488 = vld [vmem:[#allocation2] sm:$0xff]
          %v489 = vld [vmem:[#allocation2 + $0x8] sm:$0xff]
          %v490 = vld [vmem:[#allocation2 + $0x10] sm:$0xff]
          %v491 = vld [vmem:[#allocation2 + $0x18] sm:$0xff]
          %v492 = vld [vmem:[#allocation2 + $0x20] sm:$0xff]
          %v493 = vld [vmem:[#allocation2 + $0x28] sm:$0xff]
          %v494 = vld [vmem:[#allocation2 + $0x30] sm:$0xff]
          %v495 = vld [vmem:[#allocation2 + $0x38] sm:$0xff]
          %v496 = vld [vmem:[#allocation2 + $0x40] sm:$0xff]
          %v497 = vld [vmem:[#allocation2 + $0x48] sm:$0xff]
          %v498 = vld [vmem:[#allocation2 + $0x50] sm:$0xff]
          %v499 = vld [vmem:[#allocation2 + $0x58] sm:$0xff]
          %v500 = vld [vmem:[#allocation2 + $0x60] sm:$0xff]
          %v501 = vld [vmem:[#allocation2 + $0x68] sm:$0xff]
          %v502 = vld [vmem:[#allocation2 + $0x70] sm:$0xff]
          %v503 = vld [vmem:[#allocation2 + $0x78] sm:$0xff]
          %504 = vmin.xlane.f32.xlu0 %v488
          %v505 = vpop.xlane.xlu0 %504
          %506 = vmin.xlane.f32.xlu0 %v489
          %v507 = vpop.xlane.xlu0 %506
          %508 = vmin.xlane.f32.xlu0 %v490
          %v509 = vpop.xlane.xlu0 %508
          %510 = vmin.xlane.f32.xlu0 %v491
          %v511 = vpop.xlane.xlu0 %510
          %512 = vmin.xlane.f32.xlu0 %v492
          %v513 = vpop.xlane.xlu0 %512
          %514 = vmin.xlane.f32.xlu0 %v493
          %v515 = vpop.xlane.xlu0 %514
          %516 = vmin.xlane.f32.xlu0 %v494
          %v517 = vpop.xlane.xlu0 %516
          %518 = vmin.xlane.f32.xlu0 %v495
          %v519 = vpop.xlane.xlu0 %518
          %520 = vmin.xlane.f32.xlu0 %v496
          %v521 = vpop.xlane.xlu0 %520
          %522 = vmin.xlane.f32.xlu0 %v497
          %v523 = vpop.xlane.xlu0 %522
          %524 = vmin.xlane.f32.xlu0 %v498
          %v525 = vpop.xlane.xlu0 %524
          %526 = vmin.xlane.f32.xlu0 %v499
          %v527 = vpop.xlane.xlu0 %526
          %528 = vmin.xlane.f32.xlu0 %v500
          %v529 = vpop.xlane.xlu0 %528
          %530 = vmin.xlane.f32.xlu0 %v501
          %v531 = vpop.xlane.xlu0 %530
          %532 = vmin.xlane.f32.xlu0 %v502
          %v533 = vpop.xlane.xlu0 %532
          %534 = vmin.xlane.f32.xlu0 %v503
          %v535 = vpop.xlane.xlu0 %534
          %v536 = vmax.f32 %v505, 0.0
          %v537 = vmax.f32 %v507, 0.0
          %v538 = vmax.f32 %v509, 0.0
          %v539 = vmax.f32 %v511, 0.0
          %v540 = vmax.f32 %v513, 0.0
          %v541 = vmax.f32 %v515, 0.0
          %v542 = vmax.f32 %v517, 0.0
          %v543 = vmax.f32 %v519, 0.0
          %v544 = vmax.f32 %v521, 0.0
          %v545 = vmax.f32 %v523, 0.0
          %v546 = vmax.f32 %v525, 0.0
          %v547 = vmax.f32 %v527, 0.0
          %v548 = vmax.f32 %v529, 0.0
          %v549 = vmax.f32 %v531, 0.0
          %v550 = vmax.f32 %v533, 0.0
          %v551 = vmax.f32 %v535, 0.0
          %v552 = vrsqrt.pop %v536
          %v553 = vmul.f32 %v536, %v552
          %vm554 = vcmp.eq.f32.partialorder %v536, inf
          %v555 = vsel %vm554, %v536, %v553
          %vm556 = vcmp.eq.f32.partialorder %v536, 0.0
          %v557 = vand.u32 %v536, 2147483648
          %v558 = vsel %vm556, %v557, %v555
          %v559 = vrsqrt.pop %v537
          %v560 = vmul.f32 %v537, %v559
          %vm561 = vcmp.eq.f32.partialorder %v537, inf
          %v562 = vsel %vm561, %v537, %v560
          %vm563 = vcmp.eq.f32.partialorder %v537, 0.0
          %v564 = vand.u32 %v537, 2147483648
          %v565 = vsel %vm563, %v564, %v562
          %v566 = vrsqrt.pop %v538
          %v567 = vmul.f32 %v538, %v566
          %vm568 = vcmp.eq.f32.partialorder %v538, inf
          %v569 = vsel %vm568, %v538, %v567
          %vm570 = vcmp.eq.f32.partialorder %v538, 0.0
          %v571 = vand.u32 %v538, 2147483648
          %v572 = vsel %vm570, %v571, %v569
          %v573 = vrsqrt.pop %v539
          %v574 = vmul.f32 %v539, %v573
          %vm575 = vcmp.eq.f32.partialorder %v539, inf
          %v576 = vsel %vm575, %v539, %v574
          %vm577 = vcmp.eq.f32.partialorder %v539, 0.0
          %v578 = vand.u32 %v539, 2147483648
          %v579 = vsel %vm577, %v578, %v576
          %v580 = vrsqrt.pop %v540
          %v581 = vmul.f32 %v540, %v580
          %vm582 = vcmp.eq.f32.partialorder %v540, inf
          %v583 = vsel %vm582, %v540, %v581
          %vm584 = vcmp.eq.f32.partialorder %v540, 0.0
          %v585 = vand.u32 %v540, 2147483648
          %v586 = vsel %vm584, %v585, %v583
          %v587 = vrsqrt.pop %v541
          %v588 = vmul.f32 %v541, %v587
          %vm589 = vcmp.eq.f32.partialorder %v541, inf
          %v590 = vsel %vm589, %v541, %v588
          %vm591 = vcmp.eq.f32.partialorder %v541, 0.0
          %v592 = vand.u32 %v541, 2147483648
          %v593 = vsel %vm591, %v592, %v590
          %v594 = vrsqrt.pop %v542
          %v595 = vmul.f32 %v542, %v594
          %vm596 = vcmp.eq.f32.partialorder %v542, inf
          %v597 = vsel %vm596, %v542, %v595
          %vm598 = vcmp.eq.f32.partialorder %v542, 0.0
          %v599 = vand.u32 %v542, 2147483648
          %v600 = vsel %vm598, %v599, %v597
          %v601 = vrsqrt.pop %v543
          %v602 = vmul.f32 %v543, %v601
          %vm603 = vcmp.eq.f32.partialorder %v543, inf
          %v604 = vsel %vm603, %v543, %v602
          %vm605 = vcmp.eq.f32.partialorder %v543, 0.0
          %v606 = vand.u32 %v543, 2147483648
          %v607 = vsel %vm605, %v606, %v604
          %v608 = vrsqrt.pop %v544
          %v609 = vmul.f32 %v544, %v608
          %vm610 = vcmp.eq.f32.partialorder %v544, inf
          %v611 = vsel %vm610, %v544, %v609
          %vm612 = vcmp.eq.f32.partialorder %v544, 0.0
          %v613 = vand.u32 %v544, 2147483648
          %v614 = vsel %vm612, %v613, %v611
          %v615 = vrsqrt.pop %v545
          %v616 = vmul.f32 %v545, %v615
          %vm617 = vcmp.eq.f32.partialorder %v545, inf
          %v618 = vsel %vm617, %v545, %v616
          %vm619 = vcmp.eq.f32.partialorder %v545, 0.0
          %v620 = vand.u32 %v545, 2147483648
          %v621 = vsel %vm619, %v620, %v618
          %v622 = vrsqrt.pop %v546
          %v623 = vmul.f32 %v546, %v622
          %vm624 = vcmp.eq.f32.partialorder %v546, inf
          %v625 = vsel %vm624, %v546, %v623
          %vm626 = vcmp.eq.f32.partialorder %v546, 0.0
          %v627 = vand.u32 %v546, 2147483648
          %v628 = vsel %vm626, %v627, %v625
          %v629 = vrsqrt.pop %v547
          %v630 = vmul.f32 %v547, %v629
          %vm631 = vcmp.eq.f32.partialorder %v547, inf
          %v632 = vsel %vm631, %v547, %v630
          %vm633 = vcmp.eq.f32.partialorder %v547, 0.0
          %v634 = vand.u32 %v547, 2147483648
          %v635 = vsel %vm633, %v634, %v632
          %v636 = vrsqrt.pop %v548
          %v637 = vmul.f32 %v548, %v636
          %vm638 = vcmp.eq.f32.partialorder %v548, inf
          %v639 = vsel %vm638, %v548, %v637
          %vm640 = vcmp.eq.f32.partialorder %v548, 0.0
          %v641 = vand.u32 %v548, 2147483648
          %v642 = vsel %vm640, %v641, %v639
          %v643 = vrsqrt.pop %v549
          %v644 = vmul.f32 %v549, %v643
          %vm645 = vcmp.eq.f32.partialorder %v549, inf
          %v646 = vsel %vm645, %v549, %v644
          %vm647 = vcmp.eq.f32.partialorder %v549, 0.0
          %v648 = vand.u32 %v549, 2147483648
          %v649 = vsel %vm647, %v648, %v646
          %v650 = vrsqrt.pop %v550
          %v651 = vmul.f32 %v550, %v650
          %vm652 = vcmp.eq.f32.partialorder %v550, inf
          %v653 = vsel %vm652, %v550, %v651
          %vm654 = vcmp.eq.f32.partialorder %v550, 0.0
          %v655 = vand.u32 %v550, 2147483648
          %v656 = vsel %vm654, %v655, %v653
          %v657 = vrsqrt.pop %v551
          %v658 = vmul.f32 %v551, %v657
          %vm659 = vcmp.eq.f32.partialorder %v551, inf
          %v660 = vsel %vm659, %v551, %v658
          %vm661 = vcmp.eq.f32.partialorder %v551, 0.0
          %v662 = vand.u32 %v551, 2147483648
          %v663 = vsel %vm661, %v662, %v660
          %v680 = vlaneseq
          %v681 = vand.u32 %v680, 127
          %v682 = vlaneseq
          %v683 = vshrl.u32 %v682, 7
          %v684 = vsub.s32 %v681, %v683
          %v685 = vrot.slane %v558, %v684
          %v686 = vadd.s32 %v681, 4294967288
          %v687 = vlaneseq
          %v688 = vshrl.u32 %v687, 7
          %v689 = vsub.s32 %v686, %v688
          %v690 = vrot.slane %v565, %v689
          %vm691 = vcmask 130112
          %v692 = vsel %vm691, %v690, %v685
          %v693 = vadd.s32 %v681, 4294967280
          %v694 = vlaneseq
          %v695 = vshrl.u32 %v694, 7
          %v696 = vsub.s32 %v693, %v695
          %v697 = vrot.slane %v572, %v696
          %vm698 = vcmask 195712
          %v699 = vsel %vm698, %v697, %v692
          %v700 = vadd.s32 %v681, 4294967272
          %v701 = vlaneseq
          %v702 = vshrl.u32 %v701, 7
          %v703 = vsub.s32 %v700, %v702
          %v704 = vrot.slane %v579, %v703
          %vm705 = vcmask 261312
          %v706 = vsel %vm705, %v704, %v699
          %v707 = vadd.s32 %v681, 4294967264
          %v708 = vlaneseq
          %v709 = vshrl.u32 %v708, 7
          %v710 = vsub.s32 %v707, %v709
          %v711 = vrot.slane %v586, %v710
          %vm712 = vcmask 326912
          %v713 = vsel %vm712, %v711, %v706
          %v714 = vadd.s32 %v681, 4294967256
          %v715 = vlaneseq
          %v716 = vshrl.u32 %v715, 7
          %v717 = vsub.s32 %v714, %v716
          %v718 = vrot.slane %v593, %v717
          %vm719 = vcmask 392512
          %v720 = vsel %vm719, %v718, %v713
          %v721 = vadd.s32 %v681, 4294967248
          %v722 = vlaneseq
          %v723 = vshrl.u32 %v722, 7
          %v724 = vsub.s32 %v721, %v723
          %v725 = vrot.slane %v600, %v724
          %vm726 = vcmask 458112
          %v727 = vsel %vm726, %v725, %v720
          %v728 = vadd.s32 %v681, 4294967240
          %v729 = vlaneseq
          %v730 = vshrl.u32 %v729, 7
          %v731 = vsub.s32 %v728, %v730
          %v732 = vrot.slane %v607, %v731
          %vm733 = vcmask 523712
          %v734 = vsel %vm733, %v732, %v727
          %v735 = vadd.s32 %v681, 4294967232
          %v736 = vlaneseq
          %v737 = vshrl.u32 %v736, 7
          %v738 = vsub.s32 %v735, %v737
          %v739 = vrot.slane %v614, %v738
          %vm740 = vcmask 589312
          %v741 = vsel %vm740, %v739, %v734
          %v742 = vadd.s32 %v681, 4294967224
          %v743 = vlaneseq
          %v744 = vshrl.u32 %v743, 7
          %v745 = vsub.s32 %v742, %v744
          %v746 = vrot.slane %v621, %v745
          %vm747 = vcmask 654912
          %v748 = vsel %vm747, %v746, %v741
          %v749 = vadd.s32 %v681, 4294967216
          %v750 = vlaneseq
          %v751 = vshrl.u32 %v750, 7
          %v752 = vsub.s32 %v749, %v751
          %v753 = vrot.slane %v628, %v752
          %vm754 = vcmask 720512
          %v755 = vsel %vm754, %v753, %v748
          %v756 = vadd.s32 %v681, 4294967208
          %v757 = vlaneseq
          %v758 = vshrl.u32 %v757, 7
          %v759 = vsub.s32 %v756, %v758
          %v760 = vrot.slane %v635, %v759
          %vm761 = vcmask 786112
          %v762 = vsel %vm761, %v760, %v755
          %v763 = vadd.s32 %v681, 4294967200
          %v764 = vlaneseq
          %v765 = vshrl.u32 %v764, 7
          %v766 = vsub.s32 %v763, %v765
          %v767 = vrot.slane %v642, %v766
          %vm768 = vcmask 851712
          %v769 = vsel %vm768, %v767, %v762
          %v770 = vadd.s32 %v681, 4294967192
          %v771 = vlaneseq
          %v772 = vshrl.u32 %v771, 7
          %v773 = vsub.s32 %v770, %v772
          %v774 = vrot.slane %v649, %v773
          %vm775 = vcmask 917312
          %v776 = vsel %vm775, %v774, %v769
          %v777 = vadd.s32 %v681, 4294967184
          %v778 = vlaneseq
          %v779 = vshrl.u32 %v778, 7
          %v780 = vsub.s32 %v777, %v779
          %v781 = vrot.slane %v656, %v780
          %vm782 = vcmask 982912
          %v783 = vsel %vm782, %v781, %v776
          %v784 = vadd.s32 %v681, 4294967176
          %v785 = vlaneseq
          %v786 = vshrl.u32 %v785, 7
          %v787 = vsub.s32 %v784, %v786
          %v788 = vrot.slane %v663, %v787
          %vm789 = vcmask 1048512
          %v790 = vsel %vm789, %v788, %v783
          %792 = vst [vmem:[%s188] sm:$0x1] %v790
        $region36: #{tpu_custom_call.1} parent=27 // pred_fallthru
          _
        %s793 = sand.u32 %s101, 1
        %s794 = scalar_lea.sflag [#allocation4], %s793
        %s795 = sand.u32 %s101, 1
        %s796 = scalar_lea.vmem [#allocation3], %s795
        // Predicated region
        $region37: #{tpu_custom_call.1} parent=27 // pred_check
          %p797 = pneg %p111
        $region38: #{tpu_custom_call.1} parent=27 // pred_check_branch
          %799 = sbr.rel (%p797) target = $region40
        $region39: #{tpu_custom_call.1} parent=27 // pred_region
          %s801 = ssub.s32 16, 16
          %802 = vsyncadd %s794, %s801
          %s803 = sadd.s32 %s22, %s21
          %s804 = smul.addr %s803, 16
          %s805 = scalar_lea.hbm %s2, %s804
          %s807 = sshll.u32 %s796, 4
          %s808 = int_to_ptr.vmem [resolvable:$true] %s807
          %810 = dma.vmem_to_hbm [thread:$0]  %s808, 16, %s805, %s794
        $region40: #{tpu_custom_call.1} parent=27 // pred_fallthru
          _
      $region28: #{tpu_custom_call.1} parent=5 // pred_fallthru
        _
      %p811 = scmp.le.s32.totalorder 2, %s11
      // Predicated region
      $region41: #{tpu_custom_call.1} parent=5 // pred_check
        %p812 = pneg %p811
      $region42: #{tpu_custom_call.1} parent=5 // pred_check_branch
        %814 = sbr.rel (%p812) target = $region44
      $region43: #{tpu_custom_call.1} parent=5 // pred_region
        %s815 = ssub.s32 %s11, 2
        // Predicated region
        $region45: #{tpu_custom_call.1} parent=43 // pred_check
          %p816 = pneg %p117
        $region46: #{tpu_custom_call.1} parent=43 // pred_check_branch
          %818 = sbr.rel (%p816) target = $region48
        $region47: #{tpu_custom_call.1} parent=43 // pred_region
          %s819 = sand.u32 %s102, 1
          %s820 = scalar_lea.sflag [#allocation4], %s819
          %s821 = sand.u32 %s102, 1
          %s822 = scalar_lea.vmem [#allocation3], %s821
          %823 = dma.done %s820, 16
        $region48: #{tpu_custom_call.1} parent=43 // pred_fallthru
          _
      $region44: #{tpu_custom_call.1} parent=5 // pred_fallthru
        _
    $region6: #{tpu_custom_call.1} parent=1 // loop_footer
      %s15 = sadd.s32 1, %s11
    $region7: #{tpu_custom_call.1} parent=1 // loop_footer_branch
      %10 = sbr.rel target = $region3
    $region8: #{tpu_custom_call.1} parent=1 // loop_exit
      _
    %824 = vsyncpa [#allocation4], 1
    %s825 = scalar_lea.sflag [#allocation4], 1
    %826 = vsyncpa %s825, 1

</llo_original>
